<compile_context>
chip_gen: v7x
topology: tpu7x:2x2x1
jax: 0.10.0
libtpu: 0.0.40
codegen_flags: <defaults>
</compile_context>

<pallas_src>
import functools

import jax
import jax.numpy as jnp
from jax import lax
from jax.experimental import pallas as pl
from jax.experimental.pallas import tpu as pltpu


def conv_bn_relu_kernel(w_ref, xcol_ref, params_ref, out_ref, *, eps):
    """One output-channel tile; the whole N*L_out extent lives in this block.

    w_ref     : (tc, K*C_in)       bf16  flattened conv weight tile
    xcol_ref  : (K*C_in, N*L_out)  bf16  im2col of the padded input (grid-invariant)
    params_ref: (tc, 2)            f32   column 0 = BN gamma, column 1 = BN beta
    out_ref   : (N, tc, L_out)     f32   normalized + ReLU'd output tile
    """
    N, _, L_out = out_ref.shape

    # Single MXU matmul (bf16 operands, f32 accumulation); RHS / result are lane-dense.
    # NOTE: the conv bias is intentionally omitted -- training-mode BN subtracts the
    # per-channel mean, which cancels a per-channel additive bias exactly.
    z = jnp.dot(w_ref[...], xcol_ref[...], preferred_element_type=jnp.float32)

    # BatchNorm1d training-mode batch statistics: per channel over all (N, L_out) columns
    # (all of them live in this block, so per-tile stats == global stats).
    inv_nl = 1.0 / z.shape[1]
    mean = jnp.sum(z, axis=1, keepdims=True) * inv_nl            # (tc, 1)
    centered = z - mean
    var = jnp.sum(centered * centered, axis=1, keepdims=True) * inv_nl   # biased var

    gamma = params_ref[:, 0:1]                                   # (tc, 1)
    beta = params_ref[:, 1:2]                                    # (tc, 1)
    scale = gamma * lax.rsqrt(var + eps)
    y = jnp.maximum(centered * scale + beta, 0.0)                # (tc, N*L_out)

    # Store directly in (N, tc, L_out) layout: per-batch lane slices (vreg-aligned when
    # L_out is a multiple of 128) -> no post-kernel HBM transpose needed.
    for n in range(N):
        out_ref[n, :, :] = y[:, n * L_out:(n + 1) * L_out]


def _padded_block_bytes(shape, dtype):
    """Rough VMEM footprint of one block, padded to (8, 128) tiles."""
    itemsize = jnp.dtype(dtype).itemsize
    lead = 1
    for d in shape[:-2]:
        lead *= d
    sub = ((shape[-2] + 7) // 8) * 8
    lane = ((shape[-1] + 127) // 128) * 128
    return lead * sub * lane * itemsize


def conv_bn_relu(x, w, b, gamma, beta, *, stride=1, eps=1e-5, c_out_tile=None):
    """x: (N, C_in, L) f32; w: (C_out, C_in, K); b, gamma, beta: (C_out,).

    Returns (N, C_out, L_out) with L_out = (L + 2*(K//2) - K)//stride + 1 (PyTorch conv,
    padding = K // 2 as in the original module).
    """
    del b  # exactly cancelled by training-mode BN's mean subtraction
    N, C_in, L = x.shape
    C_out, _, K = w.shape
    pad = K // 2
    L_out = (L + 2 * pad - K) // stride + 1
    NL = N * L_out
    KC = K * C_in

    # ---- glue (plain JAX): im2col from K static strided slices; bf16 matmul operands ----
    xpad = jnp.pad(x, ((0, 0), (0, 0), (pad, pad)))              # (N, C_in, L + 2p)
    xp = jnp.transpose(xpad, (1, 0, 2))                          # (C_in, N, L + 2p)
    span = (L_out - 1) * stride + 1
    taps = [xp[:, :, k:k + span:stride] for k in range(K)]       # K x (C_in, N, L_out)
    xcol = jnp.stack(taps, axis=0).reshape(KC, NL).astype(jnp.bfloat16)
    w2 = jnp.transpose(w, (0, 2, 1)).reshape(C_out, KC).astype(jnp.bfloat16)
    params = jnp.stack([gamma, beta], axis=1).astype(jnp.float32)    # (C_out, 2)

    # One grid step at small C_out; otherwise tile C_out (tiles should be multiples of 16).
    if c_out_tile is None or C_out % c_out_tile != 0:
        tc = C_out
    else:
        tc = c_out_tile
    grid = (C_out // tc,)

    # Explicit VMEM budget: all blocks (x2 for double-buffering) plus headroom, clamped to
    # the smallest per-generation physical VMEM (64 MiB on v7x).
    block_bytes = (
        _padded_block_bytes((tc, KC), jnp.bfloat16)
        + _padded_block_bytes((KC, NL), jnp.bfloat16)
        + _padded_block_bytes((tc, 2), jnp.float32)
        + _padded_block_bytes((N, tc, L_out), jnp.float32)
    )
    vmem_limit = int(min(64 << 20, max(16 << 20, 2 * block_bytes + (4 << 20))))

    kern = functools.partial(conv_bn_relu_kernel, eps=eps)
    out = pl.pallas_call(
        kern,
        out_shape=jax.ShapeDtypeStruct((N, C_out, L_out), jnp.float32),
        grid=grid,
        in_specs=[
            pl.BlockSpec((tc, KC), lambda i: (i, 0)),            # weight tile
            pl.BlockSpec((KC, NL), lambda i: (0, 0)),            # full im2col (grid-invariant)
            pl.BlockSpec((tc, 2), lambda i: (i, 0)),             # packed gamma/beta
        ],
        out_specs=pl.BlockSpec((N, tc, L_out), lambda i: (0, i, 0)),
        compiler_params=pltpu.CompilerParams(
            dimension_semantics=("parallel",),                   # BN is per-channel -> safe
            vmem_limit_bytes=vmem_limit,
        ),
    )(w2, xcol, params)
    return out


def reference(x, w, b, gamma, beta, *, stride=1, eps=1e-5):
    """Pure-JAX f32 reference with PyTorch Conv_BN_ReLU forward semantics (bias included)."""
    K = w.shape[2]
    pad = K // 2
    dn = lax.conv_dimension_numbers(x.shape, w.shape, ('NCH', 'OIH', 'NCH'))
    z = lax.conv_general_dilated(x, w, window_strides=(stride,),
                                 padding=[(pad, pad)], dimension_numbers=dn)
    z = z + b[None, :, None]
    mean = jnp.mean(z, axis=(0, 2), keepdims=True)
    var = jnp.mean((z - mean) ** 2, axis=(0, 2), keepdims=True)      # biased
    y = (z - mean) * lax.rsqrt(var + eps) * gamma[None, :, None] + beta[None, :, None]
    return jnp.maximum(y, 0.0)


if __name__ == "__main__":
    # Small shapes; L chosen so L_out (=128) and N*L_out (=256) are lane-dense.
    batch, in_channels, out_channels, kernel_size, length = 2, 8, 16, 3, 128

    key = jax.random.PRNGKey(0)
    kx, kw, kb, kg, kbe = jax.random.split(key, 5)

    x = jax.random.normal(kx, (batch, in_channels, length), jnp.float32)
    w = jax.random.normal(kw, (out_channels, in_channels, kernel_size), jnp.float32) * 0.1
    b = jax.random.normal(kb, (out_channels,), jnp.float32) * 0.1
    gamma = 1.0 + 0.1 * jax.random.normal(kg, (out_channels,), jnp.float32)
    beta = 0.1 * jax.random.normal(kbe, (out_channels,), jnp.float32)

    out = conv_bn_relu(x, w, b, gamma, beta, stride=1)
    out = jax.block_until_ready(out)

    ref = reference(x, w, b, gamma, beta, stride=1)
    assert out.shape == ref.shape == (batch, out_channels, length)
    # bf16 matmul operands -> loosened tolerance vs f32 reference.
    assert jnp.allclose(out, ref, atol=5e-2, rtol=5e-2), "mismatch vs reference"

    print("KERNEL_OK")
</pallas_src>

<mosaic_0001>
module attributes {stable_mosaic.version = 11 : i64} {
  func.func @conv_bn_relu_kernel(%arg0: i32, %arg1: memref<16x24xbf16, #tpu.memory_space<vmem>>, %arg2: memref<24x256xbf16, #tpu.memory_space<vmem>>, %arg3: memref<16x2xf32, #tpu.memory_space<vmem>>, %arg4: memref<2x16x128xf32, #tpu.memory_space<vmem>>) attributes {dimension_semantics = [#tpu.dimension_semantics<parallel>], iteration_bounds = array<i64: 1>, scalar_prefetch = 0 : i64, scratch_operands = 0 : i64, tpu.core_type = #tpu.core_type<tc>, window_params = [{transform_indices = @transform_0, window_bounds = array<i64: 16, 24>}, {pipeline_mode = #tpu.pipeline_mode<synchronous>, transform_indices = @transform_1, window_bounds = array<i64: 24, 256>}, {transform_indices = @transform_2, window_bounds = array<i64: 16, 2>}, {transform_indices = @transform_3, window_bounds = array<i64: 2, 16, 128>}]} {
    %c0 = arith.constant 0 : index
    %c0_0 = arith.constant 0 : index
    %0 = vector.load %arg1[%c0, %c0_0] : memref<16x24xbf16, #tpu.memory_space<vmem>>, vector<16x24xbf16>
    %c0_1 = arith.constant 0 : index
    %c0_2 = arith.constant 0 : index
    %1 = vector.load %arg2[%c0_1, %c0_2] : memref<24x256xbf16, #tpu.memory_space<vmem>>, vector<24x256xbf16>
    %cst = arith.constant dense<0.000000e+00> : vector<16x256xf32>
    %2 = tpu.matmul %0, %1, %cst {dimension_numbers = #tpu.dot_dimension_numbers<[1], [0], [0], [1], [0, 0, 1, 1], [], []>} : vector<16x24xbf16>, vector<24x256xbf16>, vector<16x256xf32> -> vector<16x256xf32>
    %cst_3 = arith.constant dense<0.000000e+00> : vector<16xf32>
    %3 = vector.multi_reduction <add>, %2, %cst_3 [1] : vector<16x256xf32> to vector<16xf32>
    %4 = vector.shape_cast %3 : vector<16xf32> to vector<16x1xf32>
    %cst_4 = arith.constant 3.906250e-03 : f32
    %5 = vector.broadcast %cst_4 : f32 to vector<16x1xf32>
    %6 = arith.mulf %4, %5 : vector<16x1xf32>
    %7 = vector.broadcast %6 : vector<16x1xf32> to vector<16x256xf32>
    %8 = arith.subf %2, %7 : vector<16x256xf32>
    %9 = arith.mulf %8, %8 : vector<16x256xf32>
    %cst_5 = arith.constant dense<0.000000e+00> : vector<16xf32>
    %10 = vector.multi_reduction <add>, %9, %cst_5 [1] : vector<16x256xf32> to vector<16xf32>
    %11 = vector.shape_cast %10 : vector<16xf32> to vector<16x1xf32>
    %cst_6 = arith.constant 3.906250e-03 : f32
    %12 = vector.broadcast %cst_6 : f32 to vector<16x1xf32>
    %13 = arith.mulf %11, %12 : vector<16x1xf32>
    %c0_7 = arith.constant 0 : index
    %c0_8 = arith.constant 0 : index
    %14 = vector.load %arg3[%c0_7, %c0_8] : memref<16x2xf32, #tpu.memory_space<vmem>>, vector<16x1xf32>
    %c0_9 = arith.constant 0 : index
    %c1 = arith.constant 1 : index
    %15 = vector.load %arg3[%c0_9, %c1] : memref<16x2xf32, #tpu.memory_space<vmem>>, vector<16x1xf32>
    %cst_10 = arith.constant 9.99999974E-6 : f32
    %16 = vector.broadcast %cst_10 : f32 to vector<16x1xf32>
    %17 = arith.addf %13, %16 : vector<16x1xf32>
    %18 = math.rsqrt %17 : vector<16x1xf32>
    %19 = arith.mulf %14, %18 : vector<16x1xf32>
    %20 = vector.broadcast %19 : vector<16x1xf32> to vector<16x256xf32>
    %21 = arith.mulf %8, %20 : vector<16x256xf32>
    %22 = vector.broadcast %15 : vector<16x1xf32> to vector<16x256xf32>
    %23 = arith.addf %21, %22 : vector<16x256xf32>
    %cst_11 = arith.constant 0.000000e+00 : f32
    %24 = vector.broadcast %cst_11 : f32 to vector<16x256xf32>
    %25 = arith.maximumf %23, %24 : vector<16x256xf32>
    %26 = vector.extract_strided_slice %25 {offsets = [0, 0], sizes = [16, 128], strides = [1, 1]} : vector<16x256xf32> to vector<16x128xf32>
    %c0_12 = arith.constant 0 : index
    %c0_13 = arith.constant 0 : index
    %c0_14 = arith.constant 0 : index
    %27 = vector.load %arg4[%c0_12, %c0_13, %c0_14] : memref<2x16x128xf32, #tpu.memory_space<vmem>>, vector<1x16x128xf32>
    %28 = vector.shape_cast %27 : vector<1x16x128xf32> to vector<16x128xf32>
    %29 = vector.shape_cast %26 : vector<16x128xf32> to vector<1x16x128xf32>
    tpu.vector_store %arg4[%c0_12, %c0_13, %c0_14], %29 {strides = array<i32>} : memref<2x16x128xf32, #tpu.memory_space<vmem>>, vector<1x16x128xf32>,
    %30 = vector.extract_strided_slice %25 {offsets = [0, 128], sizes = [16, 128], strides = [1, 1]} : vector<16x256xf32> to vector<16x128xf32>
    %c1_15 = arith.constant 1 : index
    %c0_16 = arith.constant 0 : index
    %c0_17 = arith.constant 0 : index
    %31 = vector.load %arg4[%c1_15, %c0_16, %c0_17] : memref<2x16x128xf32, #tpu.memory_space<vmem>>, vector<1x16x128xf32>
    %32 = vector.shape_cast %31 : vector<1x16x128xf32> to vector<16x128xf32>
    %33 = vector.shape_cast %30 : vector<16x128xf32> to vector<1x16x128xf32>
    tpu.vector_store %arg4[%c1_15, %c0_16, %c0_17], %33 {strides = array<i32>} : memref<2x16x128xf32, #tpu.memory_space<vmem>>, vector<1x16x128xf32>,
    return
  }
  func.func @transform_0(%arg0: i32) -> (i32, i32) {
    %c0_i32 = arith.constant 0 : i32
    %c0_i32_0 = arith.constant 0 : i32
    return %arg0, %c0_i32 : i32, i32
  }
  func.func @transform_1(%arg0: i32) -> (i32, i32) {
    %c0_i32 = arith.constant 0 : i32
    %c0_i32_0 = arith.constant 0 : i32
    %c0_i32_1 = arith.constant 0 : i32
    return %c0_i32, %c0_i32_0 : i32, i32
  }
  func.func @transform_2(%arg0: i32) -> (i32, i32) {
    %c0_i32 = arith.constant 0 : i32
    %c0_i32_0 = arith.constant 0 : i32
    return %arg0, %c0_i32 : i32, i32
  }
  func.func @transform_3(%arg0: i32) -> (i32, i32, i32) {
    %c0_i32 = arith.constant 0 : i32
    %c0_i32_0 = arith.constant 0 : i32
    %c0_i32_1 = arith.constant 0 : i32
    return %c0_i32, %arg0, %c0_i32_0 : i32, i32, i32
  }
}

</mosaic_0001>

<llo_original>
// kernel: tpu_custom_call.1
$region0: #{tpu_custom_call.1}
  #allocation0 [shape = 'u32[]', space=smem, size = 0x4, offset = 0x4, fixed_abs, tag = 'smem constant byte address 0x4 - core index']
  #allocation1 [shape = 'u32[144,128]{1,0:T(1,128)}', space=vmem, size = 0x12000, scoped, tag = 'internal scratch']
  %s0 = inlined_call_operand.vmem [shape: bf16[16,24], index: 0, kind: input, shape index: {}]
  %s1 = inlined_call_operand.hbm [shape: bf16[24,256], index: 1, kind: input, shape index: {}]
  %s2 = inlined_call_operand.vmem [shape: f32[16,2], index: 2, kind: input, shape index: {}]
  %s3 = inlined_call_operand.hbm [shape: f32[2,16,128], index: 3, kind: output, shape index: {}]
  %s4 = sld [smem:[#allocation0]]
  $region26: #{tpu_custom_call.1} parent=0
    _
  %s6 = ssub.s32 1, %s4
  %s7 = scalar_select 0, %s6, %s4
  $region1: #{tpu_custom_call.1} parent=0
    #allocation2 [shape = 'u8[12288]{0}', space=vmem, size = 0x3000, scoped, tag = 'input window, operand 1, single buffered']
    #allocation3 [shape = 's32[1]{0}', space=sflag, size = 0x4, scoped, tag = 'scoped memory for tpu_custom_call.1']
    #allocation4 [shape = 's32[1]{0}', space=sflag, size = 0x4, scoped, tag = 'scoped memory for tpu_custom_call.1']
    #allocation5 [shape = 'u8[16384]{0}', space=vmem, size = 0x4000, scoped, tag = 'output window, operand 0, single buffered']
    %8 = vsyncpa [#allocation3], 0
    %9 = vsyncpa [#allocation4], 0
    // Predicated region
    $region2: #{tpu_custom_call.1} parent=1 // pred_check
      _
    $region3: #{tpu_custom_call.1} parent=1 // pred_check_branch
      %11 = sbr.rel (0) target = $region5
    $region4: #{tpu_custom_call.1} parent=1 // pred_region
      _
    $region5: #{tpu_custom_call.1} parent=1 // pred_fallthru
      _
    // Predicated region
    $region6: #{tpu_custom_call.1} parent=1 // pred_check
      _
    $region7: #{tpu_custom_call.1} parent=1 // pred_check_branch
      %13 = sbr.rel (0) target = $region9
    $region8: #{tpu_custom_call.1} parent=1 // pred_region
      %s15 = ssub.s32 384, 384
      %16 = vsyncadd [#allocation3], %s15
      %s17 = sshll.u32 [#allocation2], 4
      %s18 = int_to_ptr.vmem [resolvable:$true] %s17
      %23 = dma.hbm_to_vmem [thread:$0]  %s1, 384, %s18, [#allocation3], 128, 128, 8
    $region9: #{tpu_custom_call.1} parent=1 // pred_fallthru
      _
    // Predicated region
    $region10: #{tpu_custom_call.1} parent=1 // pred_check
      _
    $region11: #{tpu_custom_call.1} parent=1 // pred_check_branch
      %25 = sbr.rel (0) target = $region13
    $region12: #{tpu_custom_call.1} parent=1 // pred_region
      _
    $region13: #{tpu_custom_call.1} parent=1 // pred_fallthru
      _
    // Predicated region
    $region14: #{tpu_custom_call.1} parent=1 // pred_check
      _
    $region15: #{tpu_custom_call.1} parent=1 // pred_check_branch
      %27 = sbr.rel (0) target = $region17
    $region16: #{tpu_custom_call.1} parent=1 // pred_region
      %28 = dma.done [#allocation3], 384
    $region17: #{tpu_custom_call.1} parent=1 // pred_fallthru
      _
    %v30 = vld [vmem:[%s0] sm:$0xf]
    %v31 = vld [vmem:[%s0 + $0x4] sm:$0xf]
    %v32 = vld [vmem:[#allocation2] sm:$0xff]
    %v33 = vld [vmem:[#allocation2 + $0x8] sm:$0xff]
    %v34 = vld [vmem:[#allocation2 + $0x10] sm:$0xff]
    %v37 = vunpack.c.l.b16 %v30
    %v38 = vunpack.c.l.b16 %v31
    %v39 = vpack.c.b16 %v38, %v37
    %v43 = vunpack.c.l.b16 %v32
    %v44 = vunpack.c.h.b16 %v32
    %v45 = vunpack.c.l.b16 %v33
    %v46 = vunpack.c.h.b16 %v33
    %v47 = vunpack.c.l.b16 %v34
    %v48 = vunpack.c.h.b16 %v34
    %v49 = vpack.c.b16 %v45, %v43
    %v50 = vpack.c.b16 %v46, %v44
    %v51 = vpack.c.b16 %v47, %v47
    %v52 = vpack.c.b16 %v48, %v48
    %vm55 = vcmask 195584
    %v57 = vsel %vm55, %v39, 0
    %vm59 = vcmask 1043456
    %v61 = vsel %vm59, %v51, 0
    %v64 = vsel %vm59, %v52, 0
    %66 = vmatprep.subr.bf16.mxu0 %v50
    %67 = vmatpush1.bf16.msra.mxu0 %v49
    %68 = vmatprep.subr.bf16.mxu0 %v64
    %69 = vmatpush1.bf16.msra.mxu0 %v61
    %70 = vmatprep.subr.bf16.mxu0 0
    %71 = vmatpush1.bf16.msra.mxu0 0
    %72 = vmatprep.subr.bf16.mxu0 0
    %73 = vmatpush1.bf16.msra.mxu0 0
    %74 = vmatprep.subr.bf16.mxu0 0
    %75 = vmatpush1.bf16.msra.mxu0 0
    %76 = vmatprep.subr.bf16.mxu0 0
    %77 = vmatpush1.bf16.msra.mxu0 0
    %78 = vmatprep.subr.bf16.mxu0 0
    %79 = vmatpush1.bf16.msra.mxu0 0
    %80 = vmatprep.subr.bf16.mxu0 0
    %81 = vmatpush1.bf16.msra.mxu0 0
    %82 = vmatprep.subr.bf16.mxu0 0
    %83 = vmatpush1.bf16.msra.mxu0 0
    %84 = vmatprep.subr.bf16.mxu0 0
    %85 = vmatpush1.bf16.msra.mxu0 0
    %86 = vmatprep.subr.bf16.mxu0 0
    %87 = vmatpush1.bf16.msra.mxu0 0
    %88 = vmatprep.subr.bf16.mxu0 0
    %89 = vmatpush1.bf16.msra.mxu0 0
    %90 = vmatprep.subr.bf16.mxu0 0
    %91 = vmatpush1.bf16.msra.mxu0 0
    %92 = vmatprep.subr.bf16.mxu0 0
    %93 = vmatpush1.bf16.msra.mxu0 0
    %94 = vmatprep.subr.bf16.mxu0 0
    %95 = vmatpush1.bf16.msra.mxu0 0
    %96 = vmatprep.subr.bf16.mxu0 0
    %97 = vmatpush1.bf16.msra.mxu0 0
    %98 = vmatprep.mubr.bf16.mxu0 0
    %99 = vmatmul.mubr.bf16.gmra.mrb[0].mxu0 %v57
    %v100 = vpop.f32.mrb[0].mxu0
    %v101 = vadd.f32 0.0, %v100
    %v102 = vpop.f32.mrb[0].mxu0
    %v103 = vadd.f32 0.0, %v102
    %v104 = vpop.f32.mrb[0].mxu0
    %v105 = vadd.f32 0.0, %v104
    %v106 = vpop.f32.mrb[0].mxu0
    %v107 = vadd.f32 0.0, %v106
    %108 = vdwg.mxu0
    %v109 = vadd.f32 %v101, %v103
    %110 = vadd.xlane.f32.xlu0 %v109
    %v111 = vpop.xlane.xlu0 %110
    %v112 = vadd.f32 %v105, %v107
    %113 = vadd.xlane.f32.xlu0 %v112
    %v114 = vpop.xlane.xlu0 %113
    %v115 = vmul.f32 %v111, 0.00390625
    %v116 = vmul.f32 %v114, 0.00390625
    %v117 = vsub.f32 %v101, %v115
    %v118 = vsub.f32 %v103, %v115
    %v119 = vsub.f32 %v105, %v116
    %v120 = vsub.f32 %v107, %v116
    %v121 = vmul.f32 %v117, %v117
    %v122 = vmul.f32 %v118, %v118
    %v123 = vmul.f32 %v119, %v119
    %v124 = vmul.f32 %v120, %v120
    %v125 = vadd.f32 %v121, %v122
    %126 = vadd.xlane.f32.xlu0 %v125
    %v127 = vpop.xlane.xlu0 %126
    %v128 = vadd.f32 %v123, %v124
    %129 = vadd.xlane.f32.xlu0 %v128
    %v130 = vpop.xlane.xlu0 %129
    %v131 = vmul.f32 %v127, 0.00390625
    %v132 = vmul.f32 %v130, 0.00390625
    %v133 = vld [vmem:[%s2] sm:$0xff]
    %v134 = vld [vmem:[%s2 + $0x8] sm:$0xff]
    %v135 = vadd.f32 %v131, 1e-05
    %v136 = vadd.f32 %v132, 1e-05
    %v137 = vrsqrt.pop %v135
    %v138 = vrsqrt.pop %v136
    %v139 = vmul.f32 %v133, %v137
    %v140 = vmul.f32 %v134, %v138
    %142 = vset.pattern.permute.xlu0 0
    %143 = vperm.xlu0 %142, %v139
    %v144 = vpop.permute.xlu0 %143
    %147 = vset.pattern.permute.xlu0 0
    %148 = vperm.xlu0 %147, %v140
    %v149 = vpop.permute.xlu0 %148
    %v151 = vmul.f32 %v117, %v144
    %v152 = vmul.f32 %v118, %v144
    %v153 = vmul.f32 %v119, %v149
    %v154 = vmul.f32 %v120, %v149
    %156 = vset.pattern.permute.xlu0 1
    %157 = vperm.xlu0 %156, %v133
    %v158 = vpop.permute.xlu0 %157
    %161 = vset.pattern.permute.xlu0 1
    %162 = vperm.xlu0 %161, %v134
    %v163 = vpop.permute.xlu0 %162
    %v165 = vadd.f32 %v151, %v158
    %v166 = vadd.f32 %v152, %v158
    %v167 = vadd.f32 %v153, %v163
    %v168 = vadd.f32 %v154, %v163
    %v169 = vmax.f32 %v165, 0.0
    %v170 = vmax.f32 %v166, 0.0
    %v171 = vmax.f32 %v167, 0.0
    %v172 = vmax.f32 %v168, 0.0
    %173 = vst [vmem:[#allocation5] sm:$0xff] %v169
    %174 = vst [vmem:[#allocation5 + $0x8] sm:$0xff] %v171
    %s175 = scalar_lea.vmem [#allocation5], 16
    %176 = vst [vmem:[%s175] sm:$0xff] %v170
    %177 = vst [vmem:[%s175 + $0x8] sm:$0xff] %v172
    // Predicated region
    $region18: #{tpu_custom_call.1} parent=1 // pred_check
      _
    $region19: #{tpu_custom_call.1} parent=1 // pred_check_branch
      %179 = sbr.rel (0) target = $region21
    $region20: #{tpu_custom_call.1} parent=1 // pred_region
      %s181 = ssub.s32 512, 512
      %182 = vsyncadd [#allocation4], %s181
      %s183 = sshll.u32 [#allocation5], 4
      %s184 = int_to_ptr.vmem [resolvable:$true] %s183
      %189 = dma.vmem_to_hbm [thread:$0]  %s184, 512, %s3, [#allocation4], 128, 128, 8
    $region21: #{tpu_custom_call.1} parent=1 // pred_fallthru
      _
    // Predicated region
    $region22: #{tpu_custom_call.1} parent=1 // pred_check
      _
    $region23: #{tpu_custom_call.1} parent=1 // pred_check_branch
      %191 = sbr.rel (0) target = $region25
    $region24: #{tpu_custom_call.1} parent=1 // pred_region
      %192 = dma.done [#allocation4], 512
    $region25: #{tpu_custom_call.1} parent=1 // pred_fallthru
      _
    %193 = vsyncpa [#allocation3], 1
    %194 = vsyncpa [#allocation4], 1

</llo_original>
